<compile_context>
chip_gen: v7x
topology: tpu7x:2x2x1
jax: 0.10.0
libtpu: 0.0.40
codegen_flags: <defaults>
</compile_context>

<pallas_src>
import jax
import jax.numpy as jnp
from jax.experimental import pallas as pl
from jax.experimental.pallas import tpu as pltpu


def _round_up(n, m):
    return ((n + m - 1) // m) * m


def _cdiv(a, b):
    return -(-a // b)


def _mlp_kernel(x_ref, w1_ref, b1_ref, w2_ref, b2_ref, wo_ref, bo_ref, o_ref):
    """One batch tile of  y = sigmoid(Wo @ relu(W2 @ relu(W1 @ x^T + b1) + b2) + bo).

    Transposed-activation orientation: activations are (H, TB), so the lane axis
    is the large batch-tile axis (dense VMEM temporaries, full-lane VPU work,
    lane-dense unmasked (1, TB) output store).
      x_ref : (TB, F)  streamed batch tile (bf16 or f32)
      w1_ref: (H, F), w2_ref: (H, H), wo_ref: (1, H)  -- PyTorch layouts, VMEM-resident
      b1_ref, b2_ref: (H, 1) column biases
      bo_ref: (1, 1) scalar output bias in SMEM
      o_ref : (1, 1, TB)
    """
    x = x_ref[...].astype(jnp.float32)                       # (TB, F)
    # (H, F) . (TB, F)^T -> (H, TB).  Contraction is over features only, so batch
    # rows never mix: garbage rows of a partial final tile stay independent.
    h1 = jax.lax.dot_general(
        w1_ref[...], x, (((1,), (1,)), ((), ())),
        preferred_element_type=jnp.float32) + b1_ref[...]
    h1 = jnp.maximum(h1, 0.0)                                 # (H, TB), lane-dense
    h2 = jnp.dot(w2_ref[...], h1,
                 preferred_element_type=jnp.float32) + b2_ref[...]
    h2 = jnp.maximum(h2, 0.0)                                 # (H, TB), lane-dense
    logits = jnp.dot(wo_ref[...], h2,
                     preferred_element_type=jnp.float32)      # (1, TB)
    logits = logits + bo_ref[0, 0]                            # scalar bias from SMEM
    o_ref[...] = jax.nn.sigmoid(logits).reshape(o_ref.shape).astype(o_ref.dtype)


def simple_mlp_forward(x, w1, b1, w2, b2, w_out, b_out, *,
                       block_batch=8192, min_pallas_batch=4096,
                       x_buffer_count=2):
    """Forward of SimpleMLP with PyTorch-layout parameters.

    x:     (B, F)  f32 or bf16 (bf16 recommended: x is the only O(B) operand)
    w1:    (H, F), b1: (H,)     -- self.hidden  = nn.Linear(F, H)
    w2:    (H, H), b2: (H,)     -- self.hidden2 = nn.Linear(H, H)
    w_out: (1, H), b_out: (1,)  -- self.output  = nn.Linear(H, 1)
    returns (B, 1) f32
    """
    B, F = x.shape
    H = w1.shape[0]

    w1 = jnp.asarray(w1, jnp.float32)                    # (H, F) -- PyTorch layout kept
    w2 = jnp.asarray(w2, jnp.float32)                    # (H, H)
    wo = jnp.asarray(w_out, jnp.float32).reshape(1, H)   # (1, H)
    b1c = jnp.asarray(b1, jnp.float32).reshape(H, 1)     # column biases for (H, TB) acts
    b2c = jnp.asarray(b2, jnp.float32).reshape(H, 1)
    bo = jnp.asarray(b_out, jnp.float32).reshape(1, 1)

    # Small-batch fast path: a single-tile pallas_call pays fixed launch/step
    # overhead for a problem XLA fuses trivially, with no pipelining/megacore win.
    if B < min_pallas_batch:
        xf = x.astype(jnp.float32)
        h1 = jnp.maximum(xf @ w1.T + b1c.reshape(1, H), 0.0)
        h2 = jnp.maximum(h1 @ w2.T + b2c.reshape(1, H), 0.0)
        return jax.nn.sigmoid(h2 @ wo.T + bo)

    # ---- batch-tile selection (16-row granularity: bf16 sublane packing, also
    #      satisfies the f32 8-row rule) --------------------------------------
    tb = _round_up(_cdiv(B, 2), 16)           # >= 2 tiles when B can be split (v7x megacore)
    if B >= 16384:
        tb = _round_up(_cdiv(B, 4), 16)       # >= 4 tiles for real pipelining on large B
    tb = max(16, min(tb, block_batch))

    # Explicit VMEM budgeting (feedback: re-derive for v7x's 64 MiB physical).
    # Per tile row: streamed x blocks and the in-kernel f32 copy / relayout temp of
    # the tile are lane-padded to 128 lanes; h1/h2 are lane-dense (H, TB) f32; the
    # (1, TB) f32 output is sublane-padded to 8 and double-buffered.
    x_itemsize = jnp.dtype(x.dtype).itemsize
    bytes_per_row = (x_buffer_count * 128 * x_itemsize   # streamed x blocks
                     + 2 * 128 * 4                       # f32 copy + relayout temp
                     + 2 * H * 4                         # h1, h2 (lane-dense)
                     + 2 * 8 * 4)                        # output blocks
    vmem_budget = 24 << 20                               # row-proportional budget, well under v7x
    tb = min(tb, max(16, (vmem_budget // bytes_per_row) // 16 * 16))

    num_tiles = _cdiv(B, tb)
    est_vmem = tb * bytes_per_row + (2 << 20)            # + resident weights/biases + slack
    vmem_limit = int(min(48 << 20, max(32 << 20, 2 * est_vmem)))

    # Streamed x spec; optional deeper buffering knob (sweep 2 vs 3 on real workloads).
    x_spec_kwargs = {}
    if x_buffer_count != 2:
        x_spec_kwargs["pipeline_mode"] = pl.Buffered(x_buffer_count)

    out_tiles = pl.pallas_call(
        _mlp_kernel,
        out_shape=jax.ShapeDtypeStruct((num_tiles, 1, tb), jnp.float32),
        grid_spec=pltpu.PrefetchScalarGridSpec(
            num_scalar_prefetch=0,
            grid=(num_tiles,),                            # partial final block allowed (no jnp.pad)
            in_specs=[
                pl.BlockSpec((tb, F), lambda i: (i, 0), **x_spec_kwargs),  # streamed batch tile
                pl.BlockSpec((H, F), lambda i: (0, 0)),   # VMEM-resident weights / biases
                pl.BlockSpec((H, 1), lambda i: (0, 0)),
                pl.BlockSpec((H, H), lambda i: (0, 0)),
                pl.BlockSpec((H, 1), lambda i: (0, 0)),
                pl.BlockSpec((1, H), lambda i: (0, 0)),
                pl.BlockSpec(memory_space=pltpu.MemorySpace.SMEM),         # scalar out-bias
            ],
            out_specs=pl.BlockSpec((1, 1, tb), lambda i: (i, 0, 0)),       # lane-dense row
        ),
        compiler_params=pltpu.CompilerParams(
            dimension_semantics=("parallel",),            # independent batch tiles (megacore on v7x)
            vmem_limit_bytes=vmem_limit),
    )(x, w1, b1c, w2, b2c, wo, bo)

    # Rows past B (from the partial final tile) are garbage and discarded here.
    return out_tiles.reshape(num_tiles * tb, 1)[:B]


if __name__ == "__main__":
    # NOTE: sev.data_map / sev.cluster_labels / sev_penalty / positive_penalty are
    # training-loss-only buffers in the PyTorch module; forward() never uses them.
    key = jax.random.PRNGKey(0)
    k_x, k_w1, k_b1, k_w2, k_b2, k_wo, k_bo = jax.random.split(key, 7)

    batch, n_features, n_hidden = 300, 32, 32
    x_f32 = jax.random.normal(k_x, (batch, n_features), dtype=jnp.float32)
    w1 = jax.random.normal(k_w1, (n_hidden, n_features), dtype=jnp.float32) * 0.1
    b1 = jax.random.normal(k_b1, (n_hidden,), dtype=jnp.float32) * 0.1
    w2 = jax.random.normal(k_w2, (n_hidden, n_hidden), dtype=jnp.float32) * 0.1
    b2 = jax.random.normal(k_b2, (n_hidden,), dtype=jnp.float32) * 0.1
    wo = jax.random.normal(k_wo, (1, n_hidden), dtype=jnp.float32) * 0.1
    bo = jax.random.normal(k_bo, (1,), dtype=jnp.float32) * 0.1

    # Stream x in bf16 (the only O(B) operand); all accumulation stays f32.
    x_bf16 = x_f32.astype(jnp.bfloat16)

    # Force the Pallas path (min_pallas_batch=0) with a small tile so this run
    # exercises multiple grid steps AND a partial final block (300 = 128+128+44).
    out = simple_mlp_forward(x_bf16, w1, b1, w2, b2, wo, bo,
                             block_batch=128, min_pallas_batch=0)
    out = jax.block_until_ready(out)

    # Plain-JAX reference of the PyTorch forward, using the same bf16-rounded x.
    xr = x_bf16.astype(jnp.float32)
    h1 = jnp.maximum(xr @ w1.T + b1, 0.0)
    h2 = jnp.maximum(h1 @ w2.T + b2, 0.0)
    ref = jax.nn.sigmoid(h2 @ wo.T + bo)

    assert out.shape == (batch, 1), out.shape
    assert bool(jnp.all(jnp.isfinite(out)))
    assert jnp.allclose(out, ref, atol=1e-4, rtol=1e-4), \
        float(jnp.max(jnp.abs(out - ref)))

    print("KERNEL_OK")
</pallas_src>

<mosaic_0001>
module attributes {stable_mosaic.version = 11 : i64} {
  func.func @_mlp_kernel(%arg0: i32, %arg1: memref<128x32xbf16, #tpu.memory_space<vmem>>, %arg2: memref<32x32xf32, #tpu.memory_space<vmem>>, %arg3: memref<32x1xf32, #tpu.memory_space<vmem>>, %arg4: memref<32x32xf32, #tpu.memory_space<vmem>>, %arg5: memref<32x1xf32, #tpu.memory_space<vmem>>, %arg6: memref<1x32xf32, #tpu.memory_space<vmem>>, %arg7: memref<1x1xf32, #tpu.memory_space<smem>>, %arg8: memref<1x1x128xf32, #tpu.memory_space<vmem>>) attributes {dimension_semantics = [#tpu.dimension_semantics<parallel>], iteration_bounds = array<i64: 3>, scalar_prefetch = 0 : i64, scratch_operands = 0 : i64, tpu.core_type = #tpu.core_type<tc>, window_params = [{transform_indices = @transform_0, window_bounds = array<i64: 128, 32>}, {pipeline_mode = #tpu.pipeline_mode<synchronous>, transform_indices = @transform_1, window_bounds = array<i64: 32, 32>}, {pipeline_mode = #tpu.pipeline_mode<synchronous>, transform_indices = @transform_2, window_bounds = array<i64: 32, 1>}, {pipeline_mode = #tpu.pipeline_mode<synchronous>, transform_indices = @transform_3, window_bounds = array<i64: 32, 32>}, {pipeline_mode = #tpu.pipeline_mode<synchronous>, transform_indices = @transform_4, window_bounds = array<i64: 32, 1>}, {pipeline_mode = #tpu.pipeline_mode<synchronous>, transform_indices = @transform_5, window_bounds = array<i64: 1, 32>}, {transform_indices = @transform_6, window_bounds = array<i64: 1, 1>}, {transform_indices = @transform_7, window_bounds = array<i64: 1, 1, 128>}]} {
    %c0 = arith.constant 0 : index
    %c0_0 = arith.constant 0 : index
    %0 = vector.load %arg1[%c0, %c0_0] : memref<128x32xbf16, #tpu.memory_space<vmem>>, vector<128x32xbf16>
    %1 = arith.extf %0 : vector<128x32xbf16> to vector<128x32xf32>
    %c0_1 = arith.constant 0 : index
    %c0_2 = arith.constant 0 : index
    %2 = vector.load %arg2[%c0_1, %c0_2] : memref<32x32xf32, #tpu.memory_space<vmem>>, vector<32x32xf32>
    %cst = arith.constant dense<0.000000e+00> : vector<32x128xf32>
    %3 = tpu.matmul %2, %1, %cst {dimension_numbers = #tpu.dot_dimension_numbers<[1], [1], [0], [0], [0, 0, 1, 0], [], []>} : vector<32x32xf32>, vector<128x32xf32>, vector<32x128xf32> -> vector<32x128xf32>
    %c0_3 = arith.constant 0 : index
    %c0_4 = arith.constant 0 : index
    %4 = vector.load %arg3[%c0_3, %c0_4] : memref<32x1xf32, #tpu.memory_space<vmem>>, vector<32x1xf32>
    %5 = vector.broadcast %4 : vector<32x1xf32> to vector<32x128xf32>
    %6 = arith.addf %3, %5 : vector<32x128xf32>
    %cst_5 = arith.constant 0.000000e+00 : f32
    %7 = vector.broadcast %cst_5 : f32 to vector<32x128xf32>
    %8 = arith.maximumf %6, %7 : vector<32x128xf32>
    %c0_6 = arith.constant 0 : index
    %c0_7 = arith.constant 0 : index
    %9 = vector.load %arg4[%c0_6, %c0_7] : memref<32x32xf32, #tpu.memory_space<vmem>>, vector<32x32xf32>
    %cst_8 = arith.constant dense<0.000000e+00> : vector<32x128xf32>
    %10 = tpu.matmul %9, %8, %cst_8 {dimension_numbers = #tpu.dot_dimension_numbers<[1], [0], [0], [1], [0, 0, 1, 1], [], []>} : vector<32x32xf32>, vector<32x128xf32>, vector<32x128xf32> -> vector<32x128xf32>
    %c0_9 = arith.constant 0 : index
    %c0_10 = arith.constant 0 : index
    %11 = vector.load %arg5[%c0_9, %c0_10] : memref<32x1xf32, #tpu.memory_space<vmem>>, vector<32x1xf32>
    %12 = vector.broadcast %11 : vector<32x1xf32> to vector<32x128xf32>
    %13 = arith.addf %10, %12 : vector<32x128xf32>
    %cst_11 = arith.constant 0.000000e+00 : f32
    %14 = vector.broadcast %cst_11 : f32 to vector<32x128xf32>
    %15 = arith.maximumf %13, %14 : vector<32x128xf32>
    %c0_12 = arith.constant 0 : index
    %c0_13 = arith.constant 0 : index
    %16 = vector.load %arg6[%c0_12, %c0_13] : memref<1x32xf32, #tpu.memory_space<vmem>>, vector<1x32xf32>
    %cst_14 = arith.constant dense<0.000000e+00> : vector<1x128xf32>
    %17 = tpu.matmul %16, %15, %cst_14 {dimension_numbers = #tpu.dot_dimension_numbers<[1], [0], [0], [1], [0, 0, 1, 1], [], []>} : vector<1x32xf32>, vector<32x128xf32>, vector<1x128xf32> -> vector<1x128xf32>
    %c0_15 = arith.constant 0 : index
    %c0_16 = arith.constant 0 : index
    %18 = memref.load %arg7[%c0_15, %c0_16] : memref<1x1xf32, #tpu.memory_space<smem>>
    %19 = vector.broadcast %18 : f32 to vector<1x128xf32>
    %20 = arith.addf %17, %19 : vector<1x128xf32>
    %21 = arith.negf %20 : vector<1x128xf32>
    %22 = math.exp %21 : vector<1x128xf32>
    %cst_17 = arith.constant 1.000000e+00 : f32
    %23 = vector.broadcast %cst_17 : f32 to vector<1x128xf32>
    %24 = arith.addf %23, %22 : vector<1x128xf32>
    %25 = arith.divf %23, %24 : vector<1x128xf32>
    %26 = vector.shape_cast %25 : vector<1x128xf32> to vector<1x1x128xf32>
    %c0_18 = arith.constant 0 : index
    %c0_19 = arith.constant 0 : index
    %c0_20 = arith.constant 0 : index
    %27 = vector.load %arg8[%c0_18, %c0_19, %c0_20] : memref<1x1x128xf32, #tpu.memory_space<vmem>>, vector<1x1x128xf32>
    tpu.vector_store %arg8[%c0_18, %c0_19, %c0_20], %26 {strides = array<i32>} : memref<1x1x128xf32, #tpu.memory_space<vmem>>, vector<1x1x128xf32>,
    return
  }
  func.func @transform_0(%arg0: i32) -> (i32, i32) {
    %c0_i32 = arith.constant 0 : i32
    %c0_i32_0 = arith.constant 0 : i32
    return %arg0, %c0_i32 : i32, i32
  }
  func.func @transform_1(%arg0: i32) -> (i32, i32) {
    %c0_i32 = arith.constant 0 : i32
    %c0_i32_0 = arith.constant 0 : i32
    %c0_i32_1 = arith.constant 0 : i32
    return %c0_i32, %c0_i32_0 : i32, i32
  }
  func.func @transform_2(%arg0: i32) -> (i32, i32) {
    %c0_i32 = arith.constant 0 : i32
    %c0_i32_0 = arith.constant 0 : i32
    %c0_i32_1 = arith.constant 0 : i32
    return %c0_i32, %c0_i32_0 : i32, i32
  }
  func.func @transform_3(%arg0: i32) -> (i32, i32) {
    %c0_i32 = arith.constant 0 : i32
    %c0_i32_0 = arith.constant 0 : i32
    %c0_i32_1 = arith.constant 0 : i32
    return %c0_i32, %c0_i32_0 : i32, i32
  }
  func.func @transform_4(%arg0: i32) -> (i32, i32) {
    %c0_i32 = arith.constant 0 : i32
    %c0_i32_0 = arith.constant 0 : i32
    %c0_i32_1 = arith.constant 0 : i32
    return %c0_i32, %c0_i32_0 : i32, i32
  }
  func.func @transform_5(%arg0: i32) -> (i32, i32) {
    %c0_i32 = arith.constant 0 : i32
    %c0_i32_0 = arith.constant 0 : i32
    %c0_i32_1 = arith.constant 0 : i32
    return %c0_i32, %c0_i32_0 : i32, i32
  }
  func.func @transform_6(%arg0: i32) -> (i32, i32) {
    %c0_i32 = arith.constant 0 : i32
    %c0_i32_0 = arith.constant 0 : i32
    %c0_i32_1 = arith.constant 0 : i32
    return %c0_i32, %c0_i32_0 : i32, i32
  }
  func.func @transform_7(%arg0: i32) -> (i32, i32, i32) {
    %c0_i32 = arith.constant 0 : i32
    %c0_i32_0 = arith.constant 0 : i32
    %c0_i32_1 = arith.constant 0 : i32
    return %arg0, %c0_i32, %c0_i32_0 : i32, i32, i32
  }
}

</mosaic_0001>

<llo_original>
// kernel: tpu_custom_call.1
$region0: #{tpu_custom_call.1}
  #allocation0 [shape = 'u32[]', space=smem, size = 0x4, offset = 0x4, fixed_abs, tag = 'smem constant byte address 0x4 - core index']
  #allocation1 [shape = 'u32[144,128]{1,0:T(1,128)}', space=vmem, size = 0x12000, scoped, tag = 'internal scratch']
  #allocation2 [shape = 'f32[1,1]{1,0:T(1,128)S(6)}', space=smem, size = 0x200, scoped, tag = 'scoped memory for tpu_custom_call.1']
  %s0 = inlined_call_operand.vmem [shape: bf16[300,32], index: 0, kind: input, shape index: {}]
  %s1 = inlined_call_operand.vmem [shape: f32[32,32], index: 1, kind: input, shape index: {}]
  %s2 = inlined_call_operand.vmem [shape: f32[32,1], index: 2, kind: input, shape index: {}]
  %s3 = inlined_call_operand.vmem [shape: f32[32,32], index: 3, kind: input, shape index: {}]
  %s4 = inlined_call_operand.vmem [shape: f32[32,1], index: 4, kind: input, shape index: {}]
  %s5 = inlined_call_operand.vmem [shape: f32[1,32], index: 5, kind: input, shape index: {}]
  %s6 = inlined_call_operand.<no memory space> [shape: f32[1,1], index: 6, kind: input, shape index: {}]
  %s7 = inlined_call_operand.hbm [shape: f32[3,1,128], index: 7, kind: output, shape index: {}]
  %s8 = sld [smem:[#allocation0]]
  $region61: #{tpu_custom_call.1} parent=0
    _
  %s10 = ssub.s32 1, %s8
  %s11 = scalar_select 0, %s10, %s8
  %12 = sst [smem:[#allocation2]] %s6
  $region1: #{tpu_custom_call.1} parent=0
    #allocation3 [shape = 'u8[1024]{0}', space=vmem, size = 0x400, scoped, tag = 'output window, operand 0']
    #allocation4 [shape = 's32[2]{0}', space=sflag, size = 0x8, scoped, tag = 'scoped memory for tpu_custom_call.1']
    %13 = vsyncpa [#allocation4], 0
    %s14 = scalar_lea.sflag [#allocation4], 1
    %15 = vsyncpa %s14, 0
    loop: start=0, step=1, limit=5
    $region2: #{tpu_custom_call.1} parent=1 // loop_pre_header
      _
    $region3: #{tpu_custom_call.1} parent=1 // loop_header
      %s17 = sphi 0, %s21
      %p18 = scmp.ge.s32.totalorder %s17, 5
      %s27 = sphi 0, %s29
      %s30 = sphi 0, %s27
      %s31 = sphi 0, %s30
      %s47 = sphi 0, %s31
      %s51 = sphi 0, %s51
      %s53 = sphi 0, %s51
      %s54 = sphi 0, %s53
      %s68 = sphi 0, %s54
      %s72 = sphi 0, %s72
      %s74 = sphi 0, %s72
      %s75 = sphi 0, %s74
      %s89 = sphi 0, %s75
      %s93 = sphi 0, %s93
      %s95 = sphi 0, %s93
      %s96 = sphi 0, %s95
      %s110 = sphi 0, %s96
      %s114 = sphi 0, %s114
      %s116 = sphi 0, %s114
      %s117 = sphi 0, %s116
      %s131 = sphi 0, %s117
      %s135 = sphi 0, %s135
      %s137 = sphi 0, %s135
      %s138 = sphi 0, %s137
      %s152 = sphi 0, %s138
      %s156 = sphi 0, %s156
      %s158 = sphi 0, %s156
      %s159 = sphi 0, %s158
      %s173 = sphi 0, %s159
      %s179 = sphi 0, %s181
      %s182 = sphi 0, %s179
      %s183 = sphi 0, %s182
      %s199 = sphi 0, %s183
    $region4: #{tpu_custom_call.1} parent=1 // loop_header_branch
      %20 = sbr.rel (%p18) target = $region8
    $region5: #{tpu_custom_call.1} parent=1 // loop_body
      %s22 = ssub.s32 %s17, 1
      %s23 = ssub.s32 %s17, 2
      %s24 = sadd.s32 %s17, 1
      %s25 = ssub.s32 %s17, %s24
      %p26 = scmp.eq.s32.totalorder %s25, 0
      %s28 = sadd.s32 %s27, 1
      %s29 = scalar_select %p26, %s27, %s28
      %p32 = pneg %p26
      %p33 = scmp.eq.s32.totalorder %s17, 2
      %p34 = por %p32, %p33
      %p35 = scmp.ne.s32.totalorder %s27, %s30
      %p36 = scmp.eq.s32.totalorder %s17, 0
      %p37 = por %p35, %p36
      %p38 = scmp.ne.s32.totalorder %s27, %s30
      %p39 = scmp.eq.s32.totalorder %s22, 2
      %p40 = por %p38, %p39
      %p41 = scmp.ne.s32.totalorder %s30, %s31
      %p42 = scmp.eq.s32.totalorder %s22, 0
      %p43 = por %p41, %p42
      %p44 = scmp.ne.s32.totalorder %s30, %s31
      %p45 = scmp.eq.s32.totalorder %s23, 2
      %p46 = por %p44, %p45
      %p48 = scmp.ne.s32.totalorder %s31, %s47
      %p49 = scmp.eq.s32.totalorder %s23, 0
      %p50 = por %p48, %p49
      %s52 = sadd.s32 %s51, 1
      %p55 = scmp.eq.s32.totalorder %s17, 2
      %p56 = scmp.ne.s32.totalorder %s51, %s53
      %p57 = scmp.eq.s32.totalorder %s17, 0
      %p58 = por %p56, %p57
      %p59 = scmp.ne.s32.totalorder %s51, %s53
      %p60 = scmp.eq.s32.totalorder %s22, 2
      %p61 = por %p59, %p60
      %p62 = scmp.ne.s32.totalorder %s53, %s54
      %p63 = scmp.eq.s32.totalorder %s22, 0
      %p64 = por %p62, %p63
      %p65 = scmp.ne.s32.totalorder %s53, %s54
      %p66 = scmp.eq.s32.totalorder %s23, 2
      %p67 = por %p65, %p66
      %p69 = scmp.ne.s32.totalorder %s54, %s68
      %p70 = scmp.eq.s32.totalorder %s23, 0
      %p71 = por %p69, %p70
      %s73 = sadd.s32 %s72, 1
      %p76 = scmp.eq.s32.totalorder %s17, 2
      %p77 = scmp.ne.s32.totalorder %s72, %s74
      %p78 = scmp.eq.s32.totalorder %s17, 0
      %p79 = por %p77, %p78
      %p80 = scmp.ne.s32.totalorder %s72, %s74
      %p81 = scmp.eq.s32.totalorder %s22, 2
      %p82 = por %p80, %p81
      %p83 = scmp.ne.s32.totalorder %s74, %s75
      %p84 = scmp.eq.s32.totalorder %s22, 0
      %p85 = por %p83, %p84
      %p86 = scmp.ne.s32.totalorder %s74, %s75
      %p87 = scmp.eq.s32.totalorder %s23, 2
      %p88 = por %p86, %p87
      %p90 = scmp.ne.s32.totalorder %s75, %s89
      %p91 = scmp.eq.s32.totalorder %s23, 0
      %p92 = por %p90, %p91
      %s94 = sadd.s32 %s93, 1
      %p97 = scmp.eq.s32.totalorder %s17, 2
      %p98 = scmp.ne.s32.totalorder %s93, %s95
      %p99 = scmp.eq.s32.totalorder %s17, 0
      %p100 = por %p98, %p99
      %p101 = scmp.ne.s32.totalorder %s93, %s95
      %p102 = scmp.eq.s32.totalorder %s22, 2
      %p103 = por %p101, %p102
      %p104 = scmp.ne.s32.totalorder %s95, %s96
      %p105 = scmp.eq.s32.totalorder %s22, 0
      %p106 = por %p104, %p105
      %p107 = scmp.ne.s32.totalorder %s95, %s96
      %p108 = scmp.eq.s32.totalorder %s23, 2
      %p109 = por %p107, %p108
      %p111 = scmp.ne.s32.totalorder %s96, %s110
      %p112 = scmp.eq.s32.totalorder %s23, 0
      %p113 = por %p111, %p112
      %s115 = sadd.s32 %s114, 1
      %p118 = scmp.eq.s32.totalorder %s17, 2
      %p119 = scmp.ne.s32.totalorder %s114, %s116
      %p120 = scmp.eq.s32.totalorder %s17, 0
      %p121 = por %p119, %p120
      %p122 = scmp.ne.s32.totalorder %s114, %s116
      %p123 = scmp.eq.s32.totalorder %s22, 2
      %p124 = por %p122, %p123
      %p125 = scmp.ne.s32.totalorder %s116, %s117
      %p126 = scmp.eq.s32.totalorder %s22, 0
      %p127 = por %p125, %p126
      %p128 = scmp.ne.s32.totalorder %s116, %s117
      %p129 = scmp.eq.s32.totalorder %s23, 2
      %p130 = por %p128, %p129
      %p132 = scmp.ne.s32.totalorder %s117, %s131
      %p133 = scmp.eq.s32.totalorder %s23, 0
      %p134 = por %p132, %p133
      %s136 = sadd.s32 %s135, 1
      %p139 = scmp.eq.s32.totalorder %s17, 2
      %p140 = scmp.ne.s32.totalorder %s135, %s137
      %p141 = scmp.eq.s32.totalorder %s17, 0
      %p142 = por %p140, %p141
      %p143 = scmp.ne.s32.totalorder %s135, %s137
      %p144 = scmp.eq.s32.totalorder %s22, 2
      %p145 = por %p143, %p144
      %p146 = scmp.ne.s32.totalorder %s137, %s138
      %p147 = scmp.eq.s32.totalorder %s22, 0
      %p148 = por %p146, %p147
      %p149 = scmp.ne.s32.totalorder %s137, %s138
      %p150 = scmp.eq.s32.totalorder %s23, 2
      %p151 = por %p149, %p150
      %p153 = scmp.ne.s32.totalorder %s138, %s152
      %p154 = scmp.eq.s32.totalorder %s23, 0
      %p155 = por %p153, %p154
      %s157 = sadd.s32 %s156, 1
      %p160 = scmp.eq.s32.totalorder %s17, 2
      %p161 = scmp.ne.s32.totalorder %s156, %s158
      %p162 = scmp.eq.s32.totalorder %s17, 0
      %p163 = por %p161, %p162
      %p164 = scmp.ne.s32.totalorder %s156, %s158
      %p165 = scmp.eq.s32.totalorder %s22, 2
      %p166 = por %p164, %p165
      %p167 = scmp.ne.s32.totalorder %s158, %s159
      %p168 = scmp.eq.s32.totalorder %s22, 0
      %p169 = por %p167, %p168
      %p170 = scmp.ne.s32.totalorder %s158, %s159
      %p171 = scmp.eq.s32.totalorder %s23, 2
      %p172 = por %p170, %p171
      %p174 = scmp.ne.s32.totalorder %s159, %s173
      %p175 = scmp.eq.s32.totalorder %s23, 0
      %p176 = por %p174, %p175
      %s177 = ssub.s32 %s17, %s24
      %p178 = scmp.eq.s32.totalorder %s177, 0
      %s180 = sadd.s32 %s179, 1
      %s181 = scalar_select %p178, %s179, %s180
      %p184 = pneg %p178
      %p185 = scmp.eq.s32.totalorder %s17, 2
      %p186 = por %p184, %p185
      %p187 = scmp.ne.s32.totalorder %s179, %s182
      %p188 = scmp.eq.s32.totalorder %s17, 0
      %p189 = por %p187, %p188
      %p190 = scmp.ne.s32.totalorder %s179, %s182
      %p191 = scmp.eq.s32.totalorder %s22, 2
      %p192 = por %p190, %p191
      %p193 = scmp.ne.s32.totalorder %s182, %s183
      %p194 = scmp.eq.s32.totalorder %s22, 0
      %p195 = por %p193, %p194
      %p196 = scmp.ne.s32.totalorder %s182, %s183
      %p197 = scmp.eq.s32.totalorder %s23, 2
      %p198 = por %p196, %p197
      %p200 = scmp.ne.s32.totalorder %s183, %s199
      %p201 = scmp.eq.s32.totalorder %s23, 0
      %p202 = por %p200, %p201
      %p203 = scmp.le.s32.totalorder 1, %s17
      %p204 = scmp.lt.s32.totalorder %s17, 4
      %p205 = pnand %p203, %p204
      %p206 = pneg %p205
      // Predicated region
      $region9: #{tpu_custom_call.1} parent=5 // pred_check
        _
      $region10: #{tpu_custom_call.1} parent=5 // pred_check_branch
        %208 = sbr.rel (%p205) target = $region12
      $region11: #{tpu_custom_call.1} parent=5 // pred_region
        %s209 = ssub.s32 %s17, 1
        // Predicated region
        $region13: #{tpu_custom_call.1} parent=11 // pred_check
          %p210 = pneg %p64
        $region14: #{tpu_custom_call.1} parent=11 // pred_check_branch
          %212 = sbr.rel (%p210) target = $region16
        $region15: #{tpu_custom_call.1} parent=11 // pred_region
          _
        $region16: #{tpu_custom_call.1} parent=11 // pred_fallthru
          _
        // Predicated region
        $region17: #{tpu_custom_call.1} parent=11 // pred_check
          %p213 = pneg %p85
        $region18: #{tpu_custom_call.1} parent=11 // pred_check_branch
          %215 = sbr.rel (%p213) target = $region20
        $region19: #{tpu_custom_call.1} parent=11 // pred_region
          _
        $region20: #{tpu_custom_call.1} parent=11 // pred_fallthru
          _
        // Predicated region
        $region21: #{tpu_custom_call.1} parent=11 // pred_check
          %p216 = pneg %p106
        $region22: #{tpu_custom_call.1} parent=11 // pred_check_branch
          %218 = sbr.rel (%p216) target = $region24
        $region23: #{tpu_custom_call.1} parent=11 // pred_region
          _
        $region24: #{tpu_custom_call.1} parent=11 // pred_fallthru
          _
        // Predicated region
        $region25: #{tpu_custom_call.1} parent=11 // pred_check
          %p219 = pneg %p127
        $region26: #{tpu_custom_call.1} parent=11 // pred_check_branch
          %221 = sbr.rel (%p219) target = $region28
        $region27: #{tpu_custom_call.1} parent=11 // pred_region
          _
        $region28: #{tpu_custom_call.1} parent=11 // pred_fallthru
          _
        // Predicated region
        $region29: #{tpu_custom_call.1} parent=11 // pred_check
          %p222 = pneg %p148
        $region30: #{tpu_custom_call.1} parent=11 // pred_check_branch
          %224 = sbr.rel (%p222) target = $region32
        $region31: #{tpu_custom_call.1} parent=11 // pred_region
          _
        $region32: #{tpu_custom_call.1} parent=11 // pred_fallthru
          _
        // Predicated region
        $region33: #{tpu_custom_call.1} parent=11 // pred_check
          %p225 = pneg %p169
        $region34: #{tpu_custom_call.1} parent=11 // pred_check_branch
          %227 = sbr.rel (%p225) target = $region36
        $region35: #{tpu_custom_call.1} parent=11 // pred_region
          _
        $region36: #{tpu_custom_call.1} parent=11 // pred_fallthru
          _
      $region12: #{tpu_custom_call.1} parent=5 // pred_fallthru
        _
      %p228 = scmp.lt.s32.totalorder %s17, 3
      // Predicated region
      $region37: #{tpu_custom_call.1} parent=5 // pred_check
        %p229 = pneg %p228
      $region38: #{tpu_custom_call.1} parent=5 // pred_check_branch
        %231 = sbr.rel (%p229) target = $region40
      $region39: #{tpu_custom_call.1} parent=5 // pred_region
        // Predicated region
        $region41: #{tpu_custom_call.1} parent=39 // pred_check
          %p232 = pneg %p37
        $region42: #{tpu_custom_call.1} parent=39 // pred_check_branch
          %234 = sbr.rel (%p232) target = $region44
        $region43: #{tpu_custom_call.1} parent=39 // pred_region
          %s235 = smul.u32 16, %s17
          %s236 = ssub.s32 38, %s235
          %p237 = scmp.lt.s32.totalorder %s236, 16
          %s238 = scalar_select %p237, %s236, 16
          %s239 = smul.u32 64, %s238
          %p240 = scmp.lt.s32.totalorder %s235, 37
          %s241 = scalar_select %p240, %s235, 37
          %s242 = smul.addr %s241, 4
          %s243 = scalar_lea.vmem %s0, %s242
          %s244 = smul.u32 16, %s17
          %s245 = ssub.s32 38, %s244
          %p246 = scmp.lt.s32.totalorder %s245, 16
          %s247 = scalar_select %p246, %s245, 16
          %s248 = smul.u32 64, %s247
        $region44: #{tpu_custom_call.1} parent=39 // pred_fallthru
          _
      $region40: #{tpu_custom_call.1} parent=5 // pred_fallthru
        _
      %p249 = scmp.le.s32.totalorder 1, %s17
      %p250 = scmp.lt.s32.totalorder %s17, 4
      %p251 = pnand %p249, %p250
      %p252 = pneg %p251
      // Predicated region
      $region45: #{tpu_custom_call.1} parent=5 // pred_check
        _
      $region46: #{tpu_custom_call.1} parent=5 // pred_check_branch
        %254 = sbr.rel (%p251) target = $region48
      $region47: #{tpu_custom_call.1} parent=5 // pred_region
        %s255 = ssub.s32 %s17, 1
        %s256 = smul.u32 16, %s22
        %s257 = ssub.s32 38, %s256
        %p258 = scmp.lt.s32.totalorder %s257, 16
        %s259 = scalar_select %p258, %s257, 16
        %s260 = smul.u32 64, %s259
        %p261 = scmp.lt.s32.totalorder %s256, 37
        %s262 = scalar_select %p261, %s256, 37
        %s263 = smul.addr %s262, 4
        %s264 = scalar_lea.vmem %s0, %s263
        %p265 = pneg %p43
        %p266 = pneg %p40
        %p267 = pneg %p64
        %p268 = pneg %p61
        %p269 = pneg %p85
        %p270 = pneg %p82
        %p271 = pneg %p106
        %p272 = pneg %p103
        %p273 = pneg %p127
        %p274 = pneg %p124
        %p275 = pneg %p148
        %p276 = pneg %p145
        %p277 = pneg %p169
        %p278 = pneg %p166
        %p279 = pneg %p195
        %p280 = pneg %p192
        %s281 = sand.u32 %s182, 1
        %s282 = scalar_lea.sflag [#allocation4], %s281
        %s283 = sand.u32 %s182, 1
        %s284 = scalar_lea.vmem [#allocation3], %s283
        %s285 = smul.u32 16, %s22
        %s286 = ssub.s32 38, %s285
        %p287 = scmp.lt.s32.totalorder %s286, 16
        %s288 = scalar_select %p287, %s286, 16
        %s289 = smul.u32 64, %s288
        %p290 = scmp.lt.s32.totalorder %s285, 37
        %s291 = scalar_select %p290, %s285, 37
        %s292 = smul.addr %s291, 4
        %s293 = scalar_lea.vmem %s0, %s292
        %s294 = smul.u32 16, %s22
        %s295 = ssub.s32 38, %s294
        %p296 = scmp.lt.s32.totalorder %s295, 16
        %s297 = scalar_select %p296, %s295, 16
        %s298 = smul.u32 64, %s297
        %v299 = vld [vmem:[%s293] sm:$0xf]
        %v300 = vld [vmem:[%s293 + $0x4] sm:$0xf]
        %v301 = vld [vmem:[%s293 + $0x8] sm:$0xf]
        %v302 = vld [vmem:[%s293 + $0xc] sm:$0xf]
        %v303 = vld [vmem:[%s293 + $0x10] sm:$0xf]
        %v304 = vld [vmem:[%s293 + $0x14] sm:$0xf]
        %v305 = vld [vmem:[%s293 + $0x18] sm:$0xf]
        %v306 = vld [vmem:[%s293 + $0x1c] sm:$0xf]
        %v307 = vld [vmem:[%s293 + $0x20] sm:$0xf]
        %v308 = vld [vmem:[%s293 + $0x24] sm:$0xf]
        %v309 = vld [vmem:[%s293 + $0x28] sm:$0xf]
        %v310 = vld [vmem:[%s293 + $0x2c] sm:$0xf]
        %v311 = vld [vmem:[%s293 + $0x30] sm:$0xf]
        %v312 = vld [vmem:[%s293 + $0x34] sm:$0xf]
        %v313 = vld [vmem:[%s293 + $0x38] sm:$0xf]
        %v314 = vld [vmem:[%s293 + $0x3c] sm:$0xf]
        %v315 = vunpack.c.l.bf16 %v299
        %v316 = vunpack.c.l.bf16 %v300
        %v317 = vunpack.c.l.bf16 %v301
        %v318 = vunpack.c.l.bf16 %v302
        %v319 = vunpack.c.l.bf16 %v303
        %v320 = vunpack.c.l.bf16 %v304
        %v321 = vunpack.c.l.bf16 %v305
        %v322 = vunpack.c.l.bf16 %v306
        %v323 = vunpack.c.l.bf16 %v307
        %v324 = vunpack.c.l.bf16 %v308
        %v325 = vunpack.c.l.bf16 %v309
        %v326 = vunpack.c.l.bf16 %v310
        %v327 = vunpack.c.l.bf16 %v311
        %v328 = vunpack.c.l.bf16 %v312
        %v329 = vunpack.c.l.bf16 %v313
        %v330 = vunpack.c.l.bf16 %v314
        %v331 = vld [vmem:[%s1] sm:$0xff]
        %v332 = vld [vmem:[%s1 + $0x8] sm:$0xff]
        %v333 = vld [vmem:[%s1 + $0x10] sm:$0xff]
        %v334 = vld [vmem:[%s1 + $0x18] sm:$0xff]
        %v335 = vld [vmem:[%s2] sm:$0xff]
        %v336 = vld [vmem:[%s2 + $0x8] sm:$0xff]
        %v337 = vld [vmem:[%s2 + $0x10] sm:$0xff]
        %v338 = vld [vmem:[%s2 + $0x18] sm:$0xff]
        %340 = vset.pattern.permute.xlu0 0
        %341 = vperm.xlu0 %340, %v335
        %v342 = vpop.permute.xlu0 %341
        %345 = vset.pattern.permute.xlu0 0
        %346 = vperm.xlu0 %345, %v336
        %v347 = vpop.permute.xlu0 %346
        %350 = vset.pattern.permute.xlu0 0
        %351 = vperm.xlu0 %350, %v337
        %v352 = vpop.permute.xlu0 %351
        %355 = vset.pattern.permute.xlu0 0
        %356 = vperm.xlu0 %355, %v338
        %v357 = vpop.permute.xlu0 %356
        %vm359 = vcmask 261120
        %v361 = vsel %vm359, %v331, 0
        %v364 = vsel %vm359, %v332, 0
        %v367 = vsel %vm359, %v333, 0
        %v370 = vsel %vm359, %v334, 0
        %v373 = vsel %vm359, %v315, 0
        %v376 = vsel %vm359, %v316, 0
        %v379 = vsel %vm359, %v317, 0
        %v382 = vsel %vm359, %v318, 0
        %v385 = vsel %vm359, %v319, 0
        %v388 = vsel %vm359, %v320, 0
        %v391 = vsel %vm359, %v321, 0
        %v394 = vsel %vm359, %v322, 0
        %v397 = vsel %vm359, %v323, 0
        %v400 = vsel %vm359, %v324, 0
        %v403 = vsel %vm359, %v325, 0
        %v406 = vsel %vm359, %v326, 0
        %v409 = vsel %vm359, %v327, 0
        %v412 = vsel %vm359, %v328, 0
        %v415 = vsel %vm359, %v329, 0
        %v418 = vsel %vm359, %v330, 0
        %420 = vmatprep.subr.mxu0 0.0
        %421 = vmatpush1.xpose.msra.mxu0 %v373
        %422 = vmatprep.subr.mxu0 0.0
        %423 = vmatpush1.xpose.msra.mxu0 %v376
        %424 = vmatprep.subr.mxu0 0.0
        %425 = vmatpush1.xpose.msra.mxu0 %v379
        %426 = vmatprep.subr.mxu0 0.0
        %427 = vmatpush1.xpose.msra.mxu0 %v382
        %428 = vmatprep.subr.mxu0 0.0
        %429 = vmatpush1.xpose.msra.mxu0 %v385
        %430 = vmatprep.subr.mxu0 0.0
        %431 = vmatpush1.xpose.msra.mxu0 %v388
        %432 = vmatprep.subr.mxu0 0.0
        %433 = vmatpush1.xpose.msra.mxu0 %v391
        %434 = vmatprep.subr.mxu0 0.0
        %435 = vmatpush1.xpose.msra.mxu0 %v394
        %436 = vmatprep.subr.mxu0 0.0
        %437 = vmatpush1.xpose.msra.mxu0 %v397
        %438 = vmatprep.subr.mxu0 0.0
        %439 = vmatpush1.xpose.msra.mxu0 %v400
        %440 = vmatprep.subr.mxu0 0.0
        %441 = vmatpush1.xpose.msra.mxu0 %v403
        %442 = vmatprep.subr.mxu0 0.0
        %443 = vmatpush1.xpose.msra.mxu0 %v406
        %444 = vmatprep.subr.mxu0 0.0
        %445 = vmatpush1.xpose.msra.mxu0 %v409
        %446 = vmatprep.subr.mxu0 0.0
        %447 = vmatpush1.xpose.msra.mxu0 %v412
        %448 = vmatprep.subr.mxu0 0.0
        %449 = vmatpush1.xpose.msra.mxu0 %v415
        %450 = vmatprep.subr.mxu0 0.0
        %451 = vmatpush1.xpose.msra.mxu0 %v418
        %452 = vmatprep.subr.mxu0 0.0
        %453 = vmatpush1.xpose.msra.mxu0 0.0
        %454 = vmatprep.subr.mxu0 0.0
        %455 = vmatpush1.xpose.msra.mxu0 0.0
        %456 = vmatprep.subr.mxu0 0.0
        %457 = vmatpush1.xpose.msra.mxu0 0.0
        %458 = vmatprep.subr.mxu0 0.0
        %459 = vmatpush1.xpose.msra.mxu0 0.0
        %460 = vmatprep.subr.mxu0 0.0
        %461 = vmatpush1.xpose.msra.mxu0 0.0
        %462 = vmatprep.subr.mxu0 0.0
        %463 = vmatpush1.xpose.msra.mxu0 0.0
        %464 = vmatprep.subr.mxu0 0.0
        %465 = vmatpush1.xpose.msra.mxu0 0.0
        %466 = vmatprep.subr.mxu0 0.0
        %467 = vmatpush1.xpose.msra.mxu0 0.0
        %468 = vmatprep.subr.mxu0 0.0
        %469 = vmatpush1.xpose.msra.mxu0 0.0
        %470 = vmatprep.subr.mxu0 0.0
        %471 = vmatpush1.xpose.msra.mxu0 0.0
        %472 = vmatprep.subr.mxu0 0.0
        %473 = vmatpush1.xpose.msra.mxu0 0.0
        %474 = vmatprep.subr.mxu0 0.0
        %475 = vmatpush1.xpose.msra.mxu0 0.0
        %476 = vmatprep.subr.mxu0 0.0
        %477 = vmatpush1.xpose.msra.mxu0 0.0
        %478 = vmatprep.subr.mxu0 0.0
        %479 = vmatpush1.xpose.msra.mxu0 0.0
        %480 = vmatprep.subr.mxu0 0.0
        %481 = vmatpush1.xpose.msra.mxu0 0.0
        %482 = vmatprep.subr.mxu0 0.0
        %483 = vmatpush1.xpose.msra.mxu0 0.0
        %484 = vmatprep.mubr.f32.mxu0 0.0
        %485 = vmatmul.mubr.f32.gmra.mrb[0].mxu0 %v361
        %v486 = vpop.f32.mrb[0].mxu0
        %v487 = vadd.f32 %v342, %v486
        %v488 = vpop.f32.mrb[0].mxu0
        %489 = vmatprep.mubr.f32.mxu0 0.0
        %490 = vmatmul.mubr.f32.gmra.mrb[0].mxu0 %v364
        %v491 = vpop.f32.mrb[0].mxu0
        %v492 = vadd.f32 %v347, %v491
        %v493 = vpop.f32.mrb[0].mxu0
        %494 = vmatprep.mubr.f32.mxu0 0.0
        %495 = vmatmul.mubr.f32.gmra.mrb[0].mxu0 %v367
        %v496 = vpop.f32.mrb[0].mxu0
        %v497 = vadd.f32 %v352, %v496
        %v498 = vpop.f32.mrb[0].mxu0
        %499 = vmatprep.mubr.f32.mxu0 0.0
        %500 = vmatmul.mubr.f32.gmra.mrb[0].mxu0 %v370
        %v501 = vpop.f32.mrb[0].mxu0
        %v502 = vadd.f32 %v357, %v501
        %v503 = vpop.f32.mrb[0].mxu0
        %504 = vdwg.mxu0
        %v505 = vmax.f32 %v487, 0.0
        %v506 = vmax.f32 %v492, 0.0
        %v507 = vmax.f32 %v497, 0.0
        %v508 = vmax.f32 %v502, 0.0
        %v509 = vld [vmem:[%s3] sm:$0xff]
        %v510 = vld [vmem:[%s3 + $0x8] sm:$0xff]
        %v511 = vld [vmem:[%s3 + $0x10] sm:$0xff]
        %v512 = vld [vmem:[%s3 + $0x18] sm:$0xff]
        %v513 = vld [vmem:[%s4] sm:$0xff]
        %v514 = vld [vmem:[%s4 + $0x8] sm:$0xff]
        %v515 = vld [vmem:[%s4 + $0x10] sm:$0xff]
        %v516 = vld [vmem:[%s4 + $0x18] sm:$0xff]
        %518 = vset.pattern.permute.xlu0 0
        %519 = vperm.xlu0 %518, %v513
        %v520 = vpop.permute.xlu0 %519
        %523 = vset.pattern.permute.xlu0 0
        %524 = vperm.xlu0 %523, %v514
        %v525 = vpop.permute.xlu0 %524
        %528 = vset.pattern.permute.xlu0 0
        %529 = vperm.xlu0 %528, %v515
        %v530 = vpop.permute.xlu0 %529
        %533 = vset.pattern.permute.xlu0 0
        %534 = vperm.xlu0 %533, %v516
        %v535 = vpop.permute.xlu0 %534
        %v538 = vsel %vm359, %v509, 0
        %v541 = vsel %vm359, %v510, 0
        %v544 = vsel %vm359, %v511, 0
        %v547 = vsel %vm359, %v512, 0
        %549 = vmatprep.subr.mxu0 0.0
        %550 = vmatpush1.msra.mxu0 %v505
        %551 = vmatprep.subr.mxu0 0.0
        %552 = vmatpush1.msra.mxu0 %v506
        %553 = vmatprep.subr.mxu0 0.0
        %554 = vmatpush1.msra.mxu0 %v507
        %555 = vmatprep.subr.mxu0 0.0
        %556 = vmatpush1.msra.mxu0 %v508
        %557 = vmatprep.subr.mxu0 0.0
        %558 = vmatpush1.msra.mxu0 0.0
        %559 = vmatprep.subr.mxu0 0.0
        %560 = vmatpush1.msra.mxu0 0.0
        %561 = vmatprep.subr.mxu0 0.0
        %562 = vmatpush1.msra.mxu0 0.0
        %563 = vmatprep.subr.mxu0 0.0
        %564 = vmatpush1.msra.mxu0 0.0
        %565 = vmatprep.subr.mxu0 0.0
        %566 = vmatpush1.msra.mxu0 0.0
        %567 = vmatprep.subr.mxu0 0.0
        %568 = vmatpush1.msra.mxu0 0.0
        %569 = vmatprep.subr.mxu0 0.0
        %570 = vmatpush1.msra.mxu0 0.0
        %571 = vmatprep.subr.mxu0 0.0
        %572 = vmatpush1.msra.mxu0 0.0
        %573 = vmatprep.subr.mxu0 0.0
        %574 = vmatpush1.msra.mxu0 0.0
        %575 = vmatprep.subr.mxu0 0.0
        %576 = vmatpush1.msra.mxu0 0.0
        %577 = vmatprep.subr.mxu0 0.0
        %578 = vmatpush1.msra.mxu0 0.0
        %579 = vmatprep.subr.mxu0 0.0
        %580 = vmatpush1.msra.mxu0 0.0
        %581 = vmatprep.subr.mxu0 0.0
        %582 = vmatpush1.msra.mxu0 0.0
        %583 = vmatprep.subr.mxu0 0.0
        %584 = vmatpush1.msra.mxu0 0.0
        %585 = vmatprep.subr.mxu0 0.0
        %586 = vmatpush1.msra.mxu0 0.0
        %587 = vmatprep.subr.mxu0 0.0
        %588 = vmatpush1.msra.mxu0 0.0
        %589 = vmatprep.subr.mxu0 0.0
        %590 = vmatpush1.msra.mxu0 0.0
        %591 = vmatprep.subr.mxu0 0.0
        %592 = vmatpush1.msra.mxu0 0.0
        %593 = vmatprep.subr.mxu0 0.0
        %594 = vmatpush1.msra.mxu0 0.0
        %595 = vmatprep.subr.mxu0 0.0
        %596 = vmatpush1.msra.mxu0 0.0
        %597 = vmatprep.subr.mxu0 0.0
        %598 = vmatpush1.msra.mxu0 0.0
        %599 = vmatprep.subr.mxu0 0.0
        %600 = vmatpush1.msra.mxu0 0.0
        %601 = vmatprep.subr.mxu0 0.0
        %602 = vmatpush1.msra.mxu0 0.0
        %603 = vmatprep.subr.mxu0 0.0
        %604 = vmatpush1.msra.mxu0 0.0
        %605 = vmatprep.subr.mxu0 0.0
        %606 = vmatpush1.msra.mxu0 0.0
        %607 = vmatprep.subr.mxu0 0.0
        %608 = vmatpush1.msra.mxu0 0.0
        %609 = vmatprep.subr.mxu0 0.0
        %610 = vmatpush1.msra.mxu0 0.0
        %611 = vmatprep.subr.mxu0 0.0
        %612 = vmatpush1.msra.mxu0 0.0
        %613 = vmatprep.mubr.f32.mxu0 0.0
        %614 = vmatmul.mubr.f32.gmra.mrb[0].mxu0 %v538
        %v615 = vpop.f32.mrb[0].mxu0
        %v616 = vadd.f32 %v520, %v615
        %v617 = vpop.f32.mrb[0].mxu0
        %618 = vmatprep.mubr.f32.mxu0 0.0
        %619 = vmatmul.mubr.f32.gmra.mrb[0].mxu0 %v541
        %v620 = vpop.f32.mrb[0].mxu0
        %v621 = vadd.f32 %v525, %v620
        %v622 = vpop.f32.mrb[0].mxu0
        %623 = vmatprep.mubr.f32.mxu0 0.0
        %624 = vmatmul.mubr.f32.gmra.mrb[0].mxu0 %v544
        %v625 = vpop.f32.mrb[0].mxu0
        %v626 = vadd.f32 %v530, %v625
        %v627 = vpop.f32.mrb[0].mxu0
        %628 = vmatprep.mubr.f32.mxu0 0.0
        %629 = vmatmul.mubr.f32.gmra.mrb[0].mxu0 %v547
        %v630 = vpop.f32.mrb[0].mxu0
        %v631 = vadd.f32 %v535, %v630
        %v632 = vpop.f32.mrb[0].mxu0
        %633 = vdwg.mxu0
        %v634 = vmax.f32 %v616, 0.0
        %v635 = vmax.f32 %v621, 0.0
        %v636 = vmax.f32 %v626, 0.0
        %v637 = vmax.f32 %v631, 0.0
        %v638 = vld [vmem:[%s5] sm:$0x1]
        %s639 = sld [smem:[#allocation2]]
        %v640 = vstv %s639
        %v642 = vsel %vm359, %v638, 0
        %644 = vmatprep.subr.mxu0 0.0
        %645 = vmatpush1.msra.mxu0 %v634
        %646 = vmatprep.subr.mxu0 0.0
        %647 = vmatpush1.msra.mxu0 %v635
        %648 = vmatprep.subr.mxu0 0.0
        %649 = vmatpush1.msra.mxu0 %v636
        %650 = vmatprep.subr.mxu0 0.0
        %651 = vmatpush1.msra.mxu0 %v637
        %652 = vmatprep.subr.mxu0 0.0
        %653 = vmatpush1.msra.mxu0 0.0
        %654 = vmatprep.subr.mxu0 0.0
        %655 = vmatpush1.msra.mxu0 0.0
        %656 = vmatprep.subr.mxu0 0.0
        %657 = vmatpush1.msra.mxu0 0.0
        %658 = vmatprep.subr.mxu0 0.0
        %659 = vmatpush1.msra.mxu0 0.0
        %660 = vmatprep.subr.mxu0 0.0
        %661 = vmatpush1.msra.mxu0 0.0
        %662 = vmatprep.subr.mxu0 0.0
        %663 = vmatpush1.msra.mxu0 0.0
        %664 = vmatprep.subr.mxu0 0.0
        %665 = vmatpush1.msra.mxu0 0.0
        %666 = vmatprep.subr.mxu0 0.0
        %667 = vmatpush1.msra.mxu0 0.0
        %668 = vmatprep.subr.mxu0 0.0
        %669 = vmatpush1.msra.mxu0 0.0
        %670 = vmatprep.subr.mxu0 0.0
        %671 = vmatpush1.msra.mxu0 0.0
        %672 = vmatprep.subr.mxu0 0.0
        %673 = vmatpush1.msra.mxu0 0.0
        %674 = vmatprep.subr.mxu0 0.0
        %675 = vmatpush1.msra.mxu0 0.0
        %676 = vmatprep.subr.mxu0 0.0
        %677 = vmatpush1.msra.mxu0 0.0
        %678 = vmatprep.subr.mxu0 0.0
        %679 = vmatpush1.msra.mxu0 0.0
        %680 = vmatprep.subr.mxu0 0.0
        %681 = vmatpush1.msra.mxu0 0.0
        %682 = vmatprep.subr.mxu0 0.0
        %683 = vmatpush1.msra.mxu0 0.0
        %684 = vmatprep.subr.mxu0 0.0
        %685 = vmatpush1.msra.mxu0 0.0
        %686 = vmatprep.subr.mxu0 0.0
        %687 = vmatpush1.msra.mxu0 0.0
        %688 = vmatprep.subr.mxu0 0.0
        %689 = vmatpush1.msra.mxu0 0.0
        %690 = vmatprep.subr.mxu0 0.0
        %691 = vmatpush1.msra.mxu0 0.0
        %692 = vmatprep.subr.mxu0 0.0
        %693 = vmatpush1.msra.mxu0 0.0
        %694 = vmatprep.subr.mxu0 0.0
        %695 = vmatpush1.msra.mxu0 0.0
        %696 = vmatprep.subr.mxu0 0.0
        %697 = vmatpush1.msra.mxu0 0.0
        %698 = vmatprep.subr.mxu0 0.0
        %699 = vmatpush1.msra.mxu0 0.0
        %700 = vmatprep.subr.mxu0 0.0
        %701 = vmatpush1.msra.mxu0 0.0
        %702 = vmatprep.subr.mxu0 0.0
        %703 = vmatpush1.msra.mxu0 0.0
        %704 = vmatprep.subr.mxu0 0.0
        %705 = vmatpush1.msra.mxu0 0.0
        %706 = vmatprep.subr.mxu0 0.0
        %707 = vmatpush1.msra.mxu0 0.0
        %708 = vmatprep.mubr.f32.mxu0 0.0
        %709 = vmatmul.mubr.f32.gmra.mrb[0].mxu0 %v642
        %v710 = vpop.f32.mrb[0].mxu0
        %v711 = vadd.f32 %v640, %v710
        %v712 = vpop.f32.mrb[0].mxu0
        %713 = vdwg.mxu0
        %v714 = vxor.u32 %v711, 2147483648
        %v715 = vmul.f32 %v714, 1.442695
        %v716 = vpow.pop %v715
        %v717 = vadd.f32 %v716, 1.0
        %v718 = vrcp.pop %v717
        %v719 = vmul.f32 1.0, %v718
        %720 = vst [vmem:[%s284] sm:$0x1] %v719
        %s721 = sand.u32 %s182, 1
        %s722 = scalar_lea.sflag [#allocation4], %s721
        %s723 = sand.u32 %s182, 1
        %s724 = scalar_lea.vmem [#allocation3], %s723
        // Predicated region
        $region49: #{tpu_custom_call.1} parent=47 // pred_check
          %p725 = pneg %p192
        $region50: #{tpu_custom_call.1} parent=47 // pred_check_branch
          %727 = sbr.rel (%p725) target = $region52
        $region51: #{tpu_custom_call.1} parent=47 // pred_region
          %s729 = ssub.s32 16, 16
          %730 = vsyncadd %s722, %s729
          %s731 = smul.addr %s22, 16
          %s732 = scalar_lea.hbm %s7, %s731
          %s734 = sshll.u32 %s724, 4
          %s735 = int_to_ptr.vmem [resolvable:$true] %s734
          %737 = dma.vmem_to_hbm [thread:$0]  %s735, 16, %s732, %s722
        $region52: #{tpu_custom_call.1} parent=47 // pred_fallthru
          _
      $region48: #{tpu_custom_call.1} parent=5 // pred_fallthru
        _
      %p738 = scmp.le.s32.totalorder 2, %s17
      // Predicated region
      $region53: #{tpu_custom_call.1} parent=5 // pred_check
        %p739 = pneg %p738
      $region54: #{tpu_custom_call.1} parent=5 // pred_check_branch
        %741 = sbr.rel (%p739) target = $region56
      $region55: #{tpu_custom_call.1} parent=5 // pred_region
        %s742 = ssub.s32 %s17, 2
        // Predicated region
        $region57: #{tpu_custom_call.1} parent=55 // pred_check
          %p743 = pneg %p198
        $region58: #{tpu_custom_call.1} parent=55 // pred_check_branch
          %745 = sbr.rel (%p743) target = $region60
        $region59: #{tpu_custom_call.1} parent=55 // pred_region
          %s746 = sand.u32 %s183, 1
          %s747 = scalar_lea.sflag [#allocation4], %s746
          %s748 = sand.u32 %s183, 1
          %s749 = scalar_lea.vmem [#allocation3], %s748
          %750 = dma.done %s747, 16
        $region60: #{tpu_custom_call.1} parent=55 // pred_fallthru
          _
      $region56: #{tpu_custom_call.1} parent=5 // pred_fallthru
        _
    $region6: #{tpu_custom_call.1} parent=1 // loop_footer
      %s21 = sadd.s32 1, %s17
    $region7: #{tpu_custom_call.1} parent=1 // loop_footer_branch
      %16 = sbr.rel target = $region3
    $region8: #{tpu_custom_call.1} parent=1 // loop_exit
      _
    %751 = vsyncpa [#allocation4], 1
    %s752 = scalar_lea.sflag [#allocation4], 1
    %753 = vsyncpa %s752, 1

</llo_original>
